<compile_context>
chip_gen: v7x
topology: tpu7x:2x2x1
jax: 0.10.0
libtpu: 0.0.40
codegen_flags: <defaults>
</compile_context>

<pallas_src>
import jax
import jax.numpy as jnp
from jax.experimental import pallas as pl
from jax.experimental.pallas import tpu as pltpu

D_IN = 4      # ctrldof + qdof*2 + qdof
HID = 60      # real hidden width
H = 64        # hidden width padded to a sublane-friendly multiple of 8


def _round_up(a, m):
    return ((a + m - 1) // m) * m


def _kernel(x_ref, cols_ref, ws_ref, b4_ref, o_ref):
    """Fused PhysNet forward on one batch tile.

    x_ref    : (4, bt)      inputs, transposed (batch on lanes)
    cols_ref : (8, 64, 1)   [W1 col0..3 | b1 | b2 | b3 | W4^T], f32
    ws_ref   : (2, 64, 64)  [W2 | W3], stored in the dot dtype
    b4_ref   : (1, 1)       final bias, f32
    o_ref    : (1, bt)      lane-dense output row
    """
    x = x_ref[...]                                       # (4, bt)

    # ---- layer 1: K=4 -> 4 VPU broadcast-FMAs, no MXU pass, no lane slices
    h = cols_ref[4]                                      # b1, (64, 1)
    for j in range(D_IN):                                # static, unrolled
        h = h + cols_ref[j] * x[j:j + 1, :]              # (64,1)*(1,bt)->(64,bt)
    h = jnp.tanh(h)

    # ---- layers 2, 3: dense 64x64 MXU dots, f32 accumulate, f32 bias/tanh
    for l in range(2):
        w = ws_ref[l]                                    # (64, 64), dot dtype
        h = jnp.tanh(
            jnp.dot(w, h.astype(w.dtype), preferred_element_type=jnp.float32)
            + cols_ref[5 + l])                           # (64, 1) f32 bias

    # ---- layer 4: single output -> VPU multiply + XLU sublane reduce,
    #      emitted as a lane-dense (1, bt) row
    out = jnp.sum(cols_ref[7] * h, axis=0, keepdims=True) + b4_ref[...]
    o_ref[...] = out.astype(o_ref.dtype)


def pack_params(params, *, dot_dtype=jnp.float32):
    """Pack the 4 Linear layers (PyTorch layout: w (out,in), b (out,)) into
    three zero-padded arrays read without any lane sub-slicing:

      cols (8, 64, 1) f32 : cols[0:4] = W1 columns, cols[4:7] = b1,b2,b3,
                            cols[7] = W4^T
      ws   (2, 64, 64)    : W2, W3 in `dot_dtype` (bf16 on v6e/v7x when a
                            ~1e-3 accuracy budget is OK; keep f32 on v5e)
      b4   (1, 1) f32     : final bias
    """
    cols = jnp.zeros((8, H, 1), jnp.float32)
    cols = cols.at[0:D_IN, :HID, 0].set(params["w1"].T)          # (4, 60)
    cols = cols.at[4, :HID, 0].set(params["b1"])
    cols = cols.at[5, :HID, 0].set(params["b2"])
    cols = cols.at[6, :HID, 0].set(params["b3"])
    cols = cols.at[7, :HID, 0].set(params["w4"][0, :])

    ws = jnp.zeros((2, H, H), jnp.float32)
    ws = ws.at[0, :HID, :HID].set(params["w2"])
    ws = ws.at[1, :HID, :HID].set(params["w3"])
    ws = ws.astype(dot_dtype)                                     # pre-cast once

    b4 = params["b4"].reshape(1, 1).astype(jnp.float32)
    return {"cols": cols, "ws": ws, "b4": b4}


def physnet_forward(x, packed, *, batch_tile=4096):
    """x: (B, 4) f32.  packed: output of pack_params().  Returns (B, 1) f32."""
    B, d_in = x.shape
    assert d_in == D_IN
    assert batch_tile % 128 == 0, "batch_tile must be lane-aligned (mult of 128)"

    # Lane-aligned batch tile: large enough to amortize per-grid-step overhead,
    # but capped at ~B/2 so the grid has >= 2 steps whenever possible and the
    # "parallel" axis can shard across v7x's two TensorCores.
    bt = min(batch_tile, max(128, _round_up((B + 1) // 2, 128)))
    Bp = _round_up(B, bt)                      # padded batch (multiple of bt)
    grid = (Bp // bt,)

    # Batch on lanes: transpose + zero-pad outside the kernel (tiny XLA ops).
    # TODO(synk): if the upstream producer can emit x as (4, B) directly, the
    # wrapper-side transpose/pad disappears.
    xT = jnp.pad(x.T, ((0, 0), (0, Bp - B)))

    out = pl.pallas_call(
        _kernel,
        out_shape=jax.ShapeDtypeStruct((1, Bp), jnp.float32),
        grid_spec=pltpu.PrefetchScalarGridSpec(
            num_scalar_prefetch=0,
            grid=grid,
            in_specs=[
                pl.BlockSpec((D_IN, bt), lambda i: (0, i)),     # activations
                pl.BlockSpec((8, H, 1), lambda i: (0, 0, 0)),   # cols (resident)
                pl.BlockSpec((2, H, H), lambda i: (0, 0, 0)),   # W2,W3 (resident)
                pl.BlockSpec((1, 1), lambda i: (0, 0)),         # b4 (resident)
            ],
            out_specs=pl.BlockSpec((1, bt), lambda i: (0, i)),  # lane-dense out
        ),
        compiler_params=pltpu.CompilerParams(
            dimension_semantics=("parallel",),    # shard steps over v7x's 2 TCs
            vmem_limit_bytes=32 * 1024 * 1024),   # safe on v7x's 64 MiB VMEM
    )(xT, packed["cols"], packed["ws"], packed["b4"])

    return out[0, :B].reshape(B, 1)


def init_physnet_params(key):
    """Deterministic init mimicking torch.nn.Linear default
    (U[-1/sqrt(fan_in), +1/sqrt(fan_in)]).  PyTorch layout: w (out,in), b (out,)."""
    dims = [D_IN, HID, HID, HID, 1]
    params = {}
    for l in range(4):
        fan_in, fan_out = dims[l], dims[l + 1]
        key, kw, kb = jax.random.split(key, 3)
        bound = 1.0 / (fan_in ** 0.5)
        params[f"w{l + 1}"] = jax.random.uniform(
            kw, (fan_out, fan_in), jnp.float32, -bound, bound)
        params[f"b{l + 1}"] = jax.random.uniform(
            kb, (fan_out,), jnp.float32, -bound, bound)
    return params


def physnet_reference(x, params):
    h = jnp.tanh(x @ params["w1"].T + params["b1"])
    h = jnp.tanh(h @ params["w2"].T + params["b2"])
    h = jnp.tanh(h @ params["w3"].T + params["b3"])
    return h @ params["w4"].T + params["b4"]


if __name__ == "__main__":
    key = jax.random.PRNGKey(0)
    k_params, k_x1, k_x2 = jax.random.split(key, 3)

    params = init_physnet_params(k_params)
    packed = pack_params(params)   # f32 dot dtype -> meets 1e-4/1e-5 tolerances

    # Small batch: single grid step, full-extent lane tile.
    x_small = jax.random.normal(k_x1, (8, D_IN), jnp.float32)
    out_small = jax.block_until_ready(physnet_forward(x_small, packed))
    ref_small = physnet_reference(x_small, params)
    assert out_small.shape == (8, 1), out_small.shape
    assert jnp.allclose(out_small, ref_small, atol=1e-4, rtol=1e-5), \
        f"max err {jnp.max(jnp.abs(out_small - ref_small))}"

    # Ragged batch: exercises zero-padding and a multi-step "parallel" grid
    # (B=300 -> bt=256, grid=(2,)).
    x_big = jax.random.normal(k_x2, (300, D_IN), jnp.float32)
    out_big = jax.block_until_ready(physnet_forward(x_big, packed))
    ref_big = physnet_reference(x_big, params)
    assert out_big.shape == (300, 1), out_big.shape
    assert jnp.allclose(out_big, ref_big, atol=1e-4, rtol=1e-5), \
        f"max err {jnp.max(jnp.abs(out_big - ref_big))}"

    print("KERNEL_OK")
</pallas_src>

<mosaic_0001>
module attributes {stable_mosaic.version = 11 : i64} {
  func.func @_kernel(%arg0: i32, %arg1: memref<4x128xf32, #tpu.memory_space<vmem>>, %arg2: memref<8x64x1xf32, #tpu.memory_space<vmem>>, %arg3: memref<2x64x64xf32, #tpu.memory_space<vmem>>, %arg4: memref<1x1xf32, #tpu.memory_space<vmem>>, %arg5: memref<1x128xf32, #tpu.memory_space<vmem>>) attributes {dimension_semantics = [#tpu.dimension_semantics<parallel>], iteration_bounds = array<i64: 1>, scalar_prefetch = 0 : i64, scratch_operands = 0 : i64, tpu.core_type = #tpu.core_type<tc>, window_params = [{transform_indices = @transform_0, window_bounds = array<i64: 4, 128>}, {pipeline_mode = #tpu.pipeline_mode<synchronous>, transform_indices = @transform_1, window_bounds = array<i64: 8, 64, 1>}, {pipeline_mode = #tpu.pipeline_mode<synchronous>, transform_indices = @transform_2, window_bounds = array<i64: 2, 64, 64>}, {pipeline_mode = #tpu.pipeline_mode<synchronous>, transform_indices = @transform_3, window_bounds = array<i64: 1, 1>}, {transform_indices = @transform_4, window_bounds = array<i64: 1, 128>}]} {
    %c0 = arith.constant 0 : index
    %c0_0 = arith.constant 0 : index
    %0 = vector.load %arg1[%c0, %c0_0] : memref<4x128xf32, #tpu.memory_space<vmem>>, vector<4x128xf32>
    %c4 = arith.constant 4 : index
    %c0_1 = arith.constant 0 : index
    %c0_2 = arith.constant 0 : index
    %1 = vector.load %arg2[%c4, %c0_1, %c0_2] : memref<8x64x1xf32, #tpu.memory_space<vmem>>, vector<1x64x1xf32>
    %2 = vector.shape_cast %1 : vector<1x64x1xf32> to vector<64x1xf32>
    %c0_3 = arith.constant 0 : index
    %c0_4 = arith.constant 0 : index
    %c0_5 = arith.constant 0 : index
    %3 = vector.load %arg2[%c0_3, %c0_4, %c0_5] : memref<8x64x1xf32, #tpu.memory_space<vmem>>, vector<1x64x1xf32>
    %4 = vector.shape_cast %3 : vector<1x64x1xf32> to vector<64x1xf32>
    %5 = vector.extract_strided_slice %0 {offsets = [0, 0], sizes = [1, 128], strides = [1, 1]} : vector<4x128xf32> to vector<1x128xf32>
    %6 = vector.broadcast %4 : vector<64x1xf32> to vector<64x128xf32>
    %7 = vector.broadcast %5 : vector<1x128xf32> to vector<64x128xf32>
    %8 = arith.mulf %6, %7 : vector<64x128xf32>
    %9 = vector.broadcast %2 : vector<64x1xf32> to vector<64x128xf32>
    %10 = arith.addf %9, %8 : vector<64x128xf32>
    %c1 = arith.constant 1 : index
    %c0_6 = arith.constant 0 : index
    %c0_7 = arith.constant 0 : index
    %11 = vector.load %arg2[%c1, %c0_6, %c0_7] : memref<8x64x1xf32, #tpu.memory_space<vmem>>, vector<1x64x1xf32>
    %12 = vector.shape_cast %11 : vector<1x64x1xf32> to vector<64x1xf32>
    %13 = vector.extract_strided_slice %0 {offsets = [1, 0], sizes = [1, 128], strides = [1, 1]} : vector<4x128xf32> to vector<1x128xf32>
    %14 = vector.broadcast %12 : vector<64x1xf32> to vector<64x128xf32>
    %15 = vector.broadcast %13 : vector<1x128xf32> to vector<64x128xf32>
    %16 = arith.mulf %14, %15 : vector<64x128xf32>
    %17 = arith.addf %10, %16 : vector<64x128xf32>
    %c2 = arith.constant 2 : index
    %c0_8 = arith.constant 0 : index
    %c0_9 = arith.constant 0 : index
    %18 = vector.load %arg2[%c2, %c0_8, %c0_9] : memref<8x64x1xf32, #tpu.memory_space<vmem>>, vector<1x64x1xf32>
    %19 = vector.shape_cast %18 : vector<1x64x1xf32> to vector<64x1xf32>
    %20 = vector.extract_strided_slice %0 {offsets = [2, 0], sizes = [1, 128], strides = [1, 1]} : vector<4x128xf32> to vector<1x128xf32>
    %21 = vector.broadcast %19 : vector<64x1xf32> to vector<64x128xf32>
    %22 = vector.broadcast %20 : vector<1x128xf32> to vector<64x128xf32>
    %23 = arith.mulf %21, %22 : vector<64x128xf32>
    %24 = arith.addf %17, %23 : vector<64x128xf32>
    %c3 = arith.constant 3 : index
    %c0_10 = arith.constant 0 : index
    %c0_11 = arith.constant 0 : index
    %25 = vector.load %arg2[%c3, %c0_10, %c0_11] : memref<8x64x1xf32, #tpu.memory_space<vmem>>, vector<1x64x1xf32>
    %26 = vector.shape_cast %25 : vector<1x64x1xf32> to vector<64x1xf32>
    %27 = vector.extract_strided_slice %0 {offsets = [3, 0], sizes = [1, 128], strides = [1, 1]} : vector<4x128xf32> to vector<1x128xf32>
    %28 = vector.broadcast %26 : vector<64x1xf32> to vector<64x128xf32>
    %29 = vector.broadcast %27 : vector<1x128xf32> to vector<64x128xf32>
    %30 = arith.mulf %28, %29 : vector<64x128xf32>
    %31 = arith.addf %24, %30 : vector<64x128xf32>
    %32 = math.tanh %31 : vector<64x128xf32>
    %c0_12 = arith.constant 0 : index
    %c0_13 = arith.constant 0 : index
    %c0_14 = arith.constant 0 : index
    %33 = vector.load %arg3[%c0_12, %c0_13, %c0_14] : memref<2x64x64xf32, #tpu.memory_space<vmem>>, vector<1x64x64xf32>
    %34 = vector.shape_cast %33 : vector<1x64x64xf32> to vector<64x64xf32>
    %cst = arith.constant dense<0.000000e+00> : vector<64x128xf32>
    %35 = tpu.matmul %34, %32, %cst {dimension_numbers = #tpu.dot_dimension_numbers<[1], [0], [0], [1], [0, 0, 1, 1], [], []>} : vector<64x64xf32>, vector<64x128xf32>, vector<64x128xf32> -> vector<64x128xf32>
    %c5 = arith.constant 5 : index
    %c0_15 = arith.constant 0 : index
    %c0_16 = arith.constant 0 : index
    %36 = vector.load %arg2[%c5, %c0_15, %c0_16] : memref<8x64x1xf32, #tpu.memory_space<vmem>>, vector<1x64x1xf32>
    %37 = vector.shape_cast %36 : vector<1x64x1xf32> to vector<64x1xf32>
    %38 = vector.broadcast %37 : vector<64x1xf32> to vector<64x128xf32>
    %39 = arith.addf %35, %38 : vector<64x128xf32>
    %40 = math.tanh %39 : vector<64x128xf32>
    %c1_17 = arith.constant 1 : index
    %c0_18 = arith.constant 0 : index
    %c0_19 = arith.constant 0 : index
    %41 = vector.load %arg3[%c1_17, %c0_18, %c0_19] : memref<2x64x64xf32, #tpu.memory_space<vmem>>, vector<1x64x64xf32>
    %42 = vector.shape_cast %41 : vector<1x64x64xf32> to vector<64x64xf32>
    %cst_20 = arith.constant dense<0.000000e+00> : vector<64x128xf32>
    %43 = tpu.matmul %42, %40, %cst_20 {dimension_numbers = #tpu.dot_dimension_numbers<[1], [0], [0], [1], [0, 0, 1, 1], [], []>} : vector<64x64xf32>, vector<64x128xf32>, vector<64x128xf32> -> vector<64x128xf32>
    %c6 = arith.constant 6 : index
    %c0_21 = arith.constant 0 : index
    %c0_22 = arith.constant 0 : index
    %44 = vector.load %arg2[%c6, %c0_21, %c0_22] : memref<8x64x1xf32, #tpu.memory_space<vmem>>, vector<1x64x1xf32>
    %45 = vector.shape_cast %44 : vector<1x64x1xf32> to vector<64x1xf32>
    %46 = vector.broadcast %45 : vector<64x1xf32> to vector<64x128xf32>
    %47 = arith.addf %43, %46 : vector<64x128xf32>
    %48 = math.tanh %47 : vector<64x128xf32>
    %c7 = arith.constant 7 : index
    %c0_23 = arith.constant 0 : index
    %c0_24 = arith.constant 0 : index
    %49 = vector.load %arg2[%c7, %c0_23, %c0_24] : memref<8x64x1xf32, #tpu.memory_space<vmem>>, vector<1x64x1xf32>
    %50 = vector.shape_cast %49 : vector<1x64x1xf32> to vector<64x1xf32>
    %51 = vector.broadcast %50 : vector<64x1xf32> to vector<64x128xf32>
    %52 = arith.mulf %51, %48 : vector<64x128xf32>
    %cst_25 = arith.constant dense<0.000000e+00> : vector<128xf32>
    %53 = vector.multi_reduction <add>, %52, %cst_25 [0] : vector<64x128xf32> to vector<128xf32>
    %54 = vector.shape_cast %53 : vector<128xf32> to vector<1x128xf32>
    %c0_26 = arith.constant 0 : index
    %c0_27 = arith.constant 0 : index
    %55 = vector.load %arg4[%c0_26, %c0_27] : memref<1x1xf32, #tpu.memory_space<vmem>>, vector<1x1xf32>
    %56 = vector.broadcast %55 : vector<1x1xf32> to vector<1x128xf32>
    %57 = arith.addf %54, %56 : vector<1x128xf32>
    %c0_28 = arith.constant 0 : index
    %c0_29 = arith.constant 0 : index
    %58 = vector.load %arg5[%c0_28, %c0_29] : memref<1x128xf32, #tpu.memory_space<vmem>>, vector<1x128xf32>
    tpu.vector_store %arg5[%c0_28, %c0_29], %57 {strides = array<i32>} : memref<1x128xf32, #tpu.memory_space<vmem>>, vector<1x128xf32>,
    return
  }
  func.func @transform_0(%arg0: i32) -> (i32, i32) {
    %c0_i32 = arith.constant 0 : i32
    %c0_i32_0 = arith.constant 0 : i32
    return %c0_i32, %arg0 : i32, i32
  }
  func.func @transform_1(%arg0: i32) -> (i32, i32, i32) {
    %c0_i32 = arith.constant 0 : i32
    %c0_i32_0 = arith.constant 0 : i32
    %c0_i32_1 = arith.constant 0 : i32
    %c0_i32_2 = arith.constant 0 : i32
    return %c0_i32, %c0_i32_0, %c0_i32_1 : i32, i32, i32
  }
  func.func @transform_2(%arg0: i32) -> (i32, i32, i32) {
    %c0_i32 = arith.constant 0 : i32
    %c0_i32_0 = arith.constant 0 : i32
    %c0_i32_1 = arith.constant 0 : i32
    %c0_i32_2 = arith.constant 0 : i32
    return %c0_i32, %c0_i32_0, %c0_i32_1 : i32, i32, i32
  }
  func.func @transform_3(%arg0: i32) -> (i32, i32) {
    %c0_i32 = arith.constant 0 : i32
    %c0_i32_0 = arith.constant 0 : i32
    %c0_i32_1 = arith.constant 0 : i32
    return %c0_i32, %c0_i32_0 : i32, i32
  }
  func.func @transform_4(%arg0: i32) -> (i32, i32) {
    %c0_i32 = arith.constant 0 : i32
    %c0_i32_0 = arith.constant 0 : i32
    return %c0_i32, %arg0 : i32, i32
  }
}

</mosaic_0001>

<llo_original>
// kernel: tpu_custom_call.1
$region0: #{tpu_custom_call.1}
  #allocation0 [shape = 'u32[]', space=smem, size = 0x4, offset = 0x4, fixed_abs, tag = 'smem constant byte address 0x4 - core index']
  #allocation1 [shape = 'u32[144,128]{1,0:T(1,128)}', space=vmem, size = 0x12000, scoped, tag = 'internal scratch']
  #allocation2 [shape = 'f32[1,1]{1,0:T(1,128)S(1)}', space=vmem, size = 0x200, scoped, tag = 'scoped memory for tpu_custom_call.1']
  %s0 = inlined_call_operand.vmem [shape: f32[4,128], index: 0, kind: input, shape index: {}]
  %s1 = inlined_call_operand.vmem [shape: f32[8,64,1], index: 1, kind: input, shape index: {}]
  %s2 = inlined_call_operand.vmem [shape: f32[2,64,64], index: 2, kind: input, shape index: {}]
  %s3 = inlined_call_operand.<no memory space> [shape: f32[1,1], index: 3, kind: input, shape index: {}]
  %s4 = inlined_call_operand.hbm [shape: f32[1,128], index: 4, kind: output, shape index: {}]
  %s5 = sld [smem:[#allocation0]]
  $region26: #{tpu_custom_call.1} parent=0
    _
  %s7 = ssub.s32 1, %s5
  %s8 = scalar_select 0, %s7, %s5
  %v9 = vstv %s3
  %10 = vst [vmem:[#allocation2] sm:$0x1] %v9
  $region1: #{tpu_custom_call.1} parent=0
    #allocation3 [shape = 'u8[512]{0}', space=vmem, size = 0x400, scoped, tag = 'output window, operand 0, single buffered']
    #allocation4 [shape = 's32[1]{0}', space=sflag, size = 0x4, scoped, tag = 'scoped memory for tpu_custom_call.1']
    %11 = vsyncpa [#allocation4], 0
    // Predicated region
    $region2: #{tpu_custom_call.1} parent=1 // pred_check
      _
    $region3: #{tpu_custom_call.1} parent=1 // pred_check_branch
      %13 = sbr.rel (0) target = $region5
    $region4: #{tpu_custom_call.1} parent=1 // pred_region
      _
    $region5: #{tpu_custom_call.1} parent=1 // pred_fallthru
      _
    // Predicated region
    $region6: #{tpu_custom_call.1} parent=1 // pred_check
      _
    $region7: #{tpu_custom_call.1} parent=1 // pred_check_branch
      %15 = sbr.rel (0) target = $region9
    $region8: #{tpu_custom_call.1} parent=1 // pred_region
      _
    $region9: #{tpu_custom_call.1} parent=1 // pred_fallthru
      _
    // Predicated region
    $region10: #{tpu_custom_call.1} parent=1 // pred_check
      _
    $region11: #{tpu_custom_call.1} parent=1 // pred_check_branch
      %17 = sbr.rel (0) target = $region13
    $region12: #{tpu_custom_call.1} parent=1 // pred_region
      _
    $region13: #{tpu_custom_call.1} parent=1 // pred_fallthru
      _
    // Predicated region
    $region14: #{tpu_custom_call.1} parent=1 // pred_check
      _
    $region15: #{tpu_custom_call.1} parent=1 // pred_check_branch
      %19 = sbr.rel (0) target = $region17
    $region16: #{tpu_custom_call.1} parent=1 // pred_region
      _
    $region17: #{tpu_custom_call.1} parent=1 // pred_fallthru
      _
    %v20 = vld [vmem:[%s0] sm:$0xf]
    %s21 = scalar_lea.vmem %s1, 256
    %v22 = vld [vmem:[%s21] sm:$0xff]
    %v23 = vld [vmem:[%s21 + $0x8] sm:$0xff]
    %v24 = vld [vmem:[%s21 + $0x10] sm:$0xff]
    %v25 = vld [vmem:[%s21 + $0x18] sm:$0xff]
    %v26 = vld [vmem:[%s21 + $0x20] sm:$0xff]
    %v27 = vld [vmem:[%s21 + $0x28] sm:$0xff]
    %v28 = vld [vmem:[%s21 + $0x30] sm:$0xff]
    %v29 = vld [vmem:[%s21 + $0x38] sm:$0xff]
    %v30 = vld [vmem:[%s1] sm:$0xff]
    %v31 = vld [vmem:[%s1 + $0x8] sm:$0xff]
    %v32 = vld [vmem:[%s1 + $0x10] sm:$0xff]
    %v33 = vld [vmem:[%s1 + $0x18] sm:$0xff]
    %v34 = vld [vmem:[%s1 + $0x20] sm:$0xff]
    %v35 = vld [vmem:[%s1 + $0x28] sm:$0xff]
    %v36 = vld [vmem:[%s1 + $0x30] sm:$0xff]
    %v37 = vld [vmem:[%s1 + $0x38] sm:$0xff]
    %39 = vset.pattern.permute.xlu0 0
    %40 = vperm.xlu0 %39, %v30
    %v41 = vpop.permute.xlu0 %40
    %44 = vset.pattern.permute.xlu0 0
    %45 = vperm.xlu0 %44, %v31
    %v46 = vpop.permute.xlu0 %45
    %49 = vset.pattern.permute.xlu0 0
    %50 = vperm.xlu0 %49, %v32
    %v51 = vpop.permute.xlu0 %50
    %54 = vset.pattern.permute.xlu0 0
    %55 = vperm.xlu0 %54, %v33
    %v56 = vpop.permute.xlu0 %55
    %59 = vset.pattern.permute.xlu0 0
    %60 = vperm.xlu0 %59, %v34
    %v61 = vpop.permute.xlu0 %60
    %64 = vset.pattern.permute.xlu0 0
    %65 = vperm.xlu0 %64, %v35
    %v66 = vpop.permute.xlu0 %65
    %69 = vset.pattern.permute.xlu0 0
    %70 = vperm.xlu0 %69, %v36
    %v71 = vpop.permute.xlu0 %70
    %74 = vset.pattern.permute.xlu0 0
    %75 = vperm.xlu0 %74, %v37
    %v76 = vpop.permute.xlu0 %75
    %v78 = vlaneseq
    %v79 = vshrl.u32 %v78, 7
    %v80 = vsub.s32 0, %v79
    %v81 = vrot.slane %v20, %v80
    %v82 = vmul.f32 %v41, %v81
    %v83 = vmul.f32 %v46, %v81
    %v84 = vmul.f32 %v51, %v81
    %v85 = vmul.f32 %v56, %v81
    %v86 = vmul.f32 %v61, %v81
    %v87 = vmul.f32 %v66, %v81
    %v88 = vmul.f32 %v71, %v81
    %v89 = vmul.f32 %v76, %v81
    %91 = vset.pattern.permute.xlu0 0
    %92 = vperm.xlu0 %91, %v22
    %v93 = vpop.permute.xlu0 %92
    %96 = vset.pattern.permute.xlu0 0
    %97 = vperm.xlu0 %96, %v23
    %v98 = vpop.permute.xlu0 %97
    %101 = vset.pattern.permute.xlu0 0
    %102 = vperm.xlu0 %101, %v24
    %v103 = vpop.permute.xlu0 %102
    %106 = vset.pattern.permute.xlu0 0
    %107 = vperm.xlu0 %106, %v25
    %v108 = vpop.permute.xlu0 %107
    %111 = vset.pattern.permute.xlu0 0
    %112 = vperm.xlu0 %111, %v26
    %v113 = vpop.permute.xlu0 %112
    %116 = vset.pattern.permute.xlu0 0
    %117 = vperm.xlu0 %116, %v27
    %v118 = vpop.permute.xlu0 %117
    %121 = vset.pattern.permute.xlu0 0
    %122 = vperm.xlu0 %121, %v28
    %v123 = vpop.permute.xlu0 %122
    %126 = vset.pattern.permute.xlu0 0
    %127 = vperm.xlu0 %126, %v29
    %v128 = vpop.permute.xlu0 %127
    %v130 = vadd.f32 %v93, %v82
    %v131 = vadd.f32 %v98, %v83
    %v132 = vadd.f32 %v103, %v84
    %v133 = vadd.f32 %v108, %v85
    %v134 = vadd.f32 %v113, %v86
    %v135 = vadd.f32 %v118, %v87
    %v136 = vadd.f32 %v123, %v88
    %v137 = vadd.f32 %v128, %v89
    %s138 = scalar_lea.vmem %s1, 64
    %v139 = vld [vmem:[%s138] sm:$0xff]
    %v140 = vld [vmem:[%s138 + $0x8] sm:$0xff]
    %v141 = vld [vmem:[%s138 + $0x10] sm:$0xff]
    %v142 = vld [vmem:[%s138 + $0x18] sm:$0xff]
    %v143 = vld [vmem:[%s138 + $0x20] sm:$0xff]
    %v144 = vld [vmem:[%s138 + $0x28] sm:$0xff]
    %v145 = vld [vmem:[%s138 + $0x30] sm:$0xff]
    %v146 = vld [vmem:[%s138 + $0x38] sm:$0xff]
    %148 = vset.pattern.permute.xlu0 0
    %149 = vperm.xlu0 %148, %v139
    %v150 = vpop.permute.xlu0 %149
    %153 = vset.pattern.permute.xlu0 0
    %154 = vperm.xlu0 %153, %v140
    %v155 = vpop.permute.xlu0 %154
    %158 = vset.pattern.permute.xlu0 0
    %159 = vperm.xlu0 %158, %v141
    %v160 = vpop.permute.xlu0 %159
    %163 = vset.pattern.permute.xlu0 0
    %164 = vperm.xlu0 %163, %v142
    %v165 = vpop.permute.xlu0 %164
    %168 = vset.pattern.permute.xlu0 0
    %169 = vperm.xlu0 %168, %v143
    %v170 = vpop.permute.xlu0 %169
    %173 = vset.pattern.permute.xlu0 0
    %174 = vperm.xlu0 %173, %v144
    %v175 = vpop.permute.xlu0 %174
    %178 = vset.pattern.permute.xlu0 0
    %179 = vperm.xlu0 %178, %v145
    %v180 = vpop.permute.xlu0 %179
    %183 = vset.pattern.permute.xlu0 0
    %184 = vperm.xlu0 %183, %v146
    %v185 = vpop.permute.xlu0 %184
    %v187 = vlaneseq
    %v188 = vshrl.u32 %v187, 7
    %v189 = vsub.s32 1, %v188
    %v190 = vrot.slane %v20, %v189
    %v191 = vmul.f32 %v150, %v190
    %v192 = vmul.f32 %v155, %v190
    %v193 = vmul.f32 %v160, %v190
    %v194 = vmul.f32 %v165, %v190
    %v195 = vmul.f32 %v170, %v190
    %v196 = vmul.f32 %v175, %v190
    %v197 = vmul.f32 %v180, %v190
    %v198 = vmul.f32 %v185, %v190
    %v199 = vadd.f32 %v130, %v191
    %v200 = vadd.f32 %v131, %v192
    %v201 = vadd.f32 %v132, %v193
    %v202 = vadd.f32 %v133, %v194
    %v203 = vadd.f32 %v134, %v195
    %v204 = vadd.f32 %v135, %v196
    %v205 = vadd.f32 %v136, %v197
    %v206 = vadd.f32 %v137, %v198
    %s207 = scalar_lea.vmem %s1, 128
    %v208 = vld [vmem:[%s207] sm:$0xff]
    %v209 = vld [vmem:[%s207 + $0x8] sm:$0xff]
    %v210 = vld [vmem:[%s207 + $0x10] sm:$0xff]
    %v211 = vld [vmem:[%s207 + $0x18] sm:$0xff]
    %v212 = vld [vmem:[%s207 + $0x20] sm:$0xff]
    %v213 = vld [vmem:[%s207 + $0x28] sm:$0xff]
    %v214 = vld [vmem:[%s207 + $0x30] sm:$0xff]
    %v215 = vld [vmem:[%s207 + $0x38] sm:$0xff]
    %217 = vset.pattern.permute.xlu0 0
    %218 = vperm.xlu0 %217, %v208
    %v219 = vpop.permute.xlu0 %218
    %222 = vset.pattern.permute.xlu0 0
    %223 = vperm.xlu0 %222, %v209
    %v224 = vpop.permute.xlu0 %223
    %227 = vset.pattern.permute.xlu0 0
    %228 = vperm.xlu0 %227, %v210
    %v229 = vpop.permute.xlu0 %228
    %232 = vset.pattern.permute.xlu0 0
    %233 = vperm.xlu0 %232, %v211
    %v234 = vpop.permute.xlu0 %233
    %237 = vset.pattern.permute.xlu0 0
    %238 = vperm.xlu0 %237, %v212
    %v239 = vpop.permute.xlu0 %238
    %242 = vset.pattern.permute.xlu0 0
    %243 = vperm.xlu0 %242, %v213
    %v244 = vpop.permute.xlu0 %243
    %247 = vset.pattern.permute.xlu0 0
    %248 = vperm.xlu0 %247, %v214
    %v249 = vpop.permute.xlu0 %248
    %252 = vset.pattern.permute.xlu0 0
    %253 = vperm.xlu0 %252, %v215
    %v254 = vpop.permute.xlu0 %253
    %v256 = vlaneseq
    %v257 = vshrl.u32 %v256, 7
    %v258 = vsub.s32 2, %v257
    %v259 = vrot.slane %v20, %v258
    %v260 = vmul.f32 %v219, %v259
    %v261 = vmul.f32 %v224, %v259
    %v262 = vmul.f32 %v229, %v259
    %v263 = vmul.f32 %v234, %v259
    %v264 = vmul.f32 %v239, %v259
    %v265 = vmul.f32 %v244, %v259
    %v266 = vmul.f32 %v249, %v259
    %v267 = vmul.f32 %v254, %v259
    %v268 = vadd.f32 %v199, %v260
    %v269 = vadd.f32 %v200, %v261
    %v270 = vadd.f32 %v201, %v262
    %v271 = vadd.f32 %v202, %v263
    %v272 = vadd.f32 %v203, %v264
    %v273 = vadd.f32 %v204, %v265
    %v274 = vadd.f32 %v205, %v266
    %v275 = vadd.f32 %v206, %v267
    %s276 = scalar_lea.vmem %s1, 192
    %v277 = vld [vmem:[%s276] sm:$0xff]
    %v278 = vld [vmem:[%s276 + $0x8] sm:$0xff]
    %v279 = vld [vmem:[%s276 + $0x10] sm:$0xff]
    %v280 = vld [vmem:[%s276 + $0x18] sm:$0xff]
    %v281 = vld [vmem:[%s276 + $0x20] sm:$0xff]
    %v282 = vld [vmem:[%s276 + $0x28] sm:$0xff]
    %v283 = vld [vmem:[%s276 + $0x30] sm:$0xff]
    %v284 = vld [vmem:[%s276 + $0x38] sm:$0xff]
    %286 = vset.pattern.permute.xlu0 0
    %287 = vperm.xlu0 %286, %v277
    %v288 = vpop.permute.xlu0 %287
    %291 = vset.pattern.permute.xlu0 0
    %292 = vperm.xlu0 %291, %v278
    %v293 = vpop.permute.xlu0 %292
    %296 = vset.pattern.permute.xlu0 0
    %297 = vperm.xlu0 %296, %v279
    %v298 = vpop.permute.xlu0 %297
    %301 = vset.pattern.permute.xlu0 0
    %302 = vperm.xlu0 %301, %v280
    %v303 = vpop.permute.xlu0 %302
    %306 = vset.pattern.permute.xlu0 0
    %307 = vperm.xlu0 %306, %v281
    %v308 = vpop.permute.xlu0 %307
    %311 = vset.pattern.permute.xlu0 0
    %312 = vperm.xlu0 %311, %v282
    %v313 = vpop.permute.xlu0 %312
    %316 = vset.pattern.permute.xlu0 0
    %317 = vperm.xlu0 %316, %v283
    %v318 = vpop.permute.xlu0 %317
    %321 = vset.pattern.permute.xlu0 0
    %322 = vperm.xlu0 %321, %v284
    %v323 = vpop.permute.xlu0 %322
    %v325 = vlaneseq
    %v326 = vshrl.u32 %v325, 7
    %v327 = vsub.s32 3, %v326
    %v328 = vrot.slane %v20, %v327
    %v329 = vmul.f32 %v288, %v328
    %v330 = vmul.f32 %v293, %v328
    %v331 = vmul.f32 %v298, %v328
    %v332 = vmul.f32 %v303, %v328
    %v333 = vmul.f32 %v308, %v328
    %v334 = vmul.f32 %v313, %v328
    %v335 = vmul.f32 %v318, %v328
    %v336 = vmul.f32 %v323, %v328
    %v337 = vadd.f32 %v268, %v329
    %v338 = vadd.f32 %v269, %v330
    %v339 = vadd.f32 %v270, %v331
    %v340 = vadd.f32 %v271, %v332
    %v341 = vadd.f32 %v272, %v333
    %v342 = vadd.f32 %v273, %v334
    %v343 = vadd.f32 %v274, %v335
    %v344 = vadd.f32 %v275, %v336
    %v345 = vtanh.pop %v337
    %v346 = vtanh.pop %v338
    %v347 = vtanh.pop %v339
    %v348 = vtanh.pop %v340
    %v349 = vtanh.pop %v341
    %v350 = vtanh.pop %v342
    %v351 = vtanh.pop %v343
    %v352 = vtanh.pop %v344
    %v353 = vld [vmem:[%s2] sm:$0xff]
    %v354 = vld [vmem:[%s2 + $0x8] sm:$0xff]
    %v355 = vld [vmem:[%s2 + $0x10] sm:$0xff]
    %v356 = vld [vmem:[%s2 + $0x18] sm:$0xff]
    %v357 = vld [vmem:[%s2 + $0x20] sm:$0xff]
    %v358 = vld [vmem:[%s2 + $0x28] sm:$0xff]
    %v359 = vld [vmem:[%s2 + $0x30] sm:$0xff]
    %v360 = vld [vmem:[%s2 + $0x38] sm:$0xff]
    %s361 = scalar_lea.vmem %s1, 320
    %v362 = vld [vmem:[%s361] sm:$0xff]
    %v363 = vld [vmem:[%s361 + $0x8] sm:$0xff]
    %v364 = vld [vmem:[%s361 + $0x10] sm:$0xff]
    %v365 = vld [vmem:[%s361 + $0x18] sm:$0xff]
    %v366 = vld [vmem:[%s361 + $0x20] sm:$0xff]
    %v367 = vld [vmem:[%s361 + $0x28] sm:$0xff]
    %v368 = vld [vmem:[%s361 + $0x30] sm:$0xff]
    %v369 = vld [vmem:[%s361 + $0x38] sm:$0xff]
    %371 = vset.pattern.permute.xlu0 0
    %372 = vperm.xlu0 %371, %v362
    %v373 = vpop.permute.xlu0 %372
    %376 = vset.pattern.permute.xlu0 0
    %377 = vperm.xlu0 %376, %v363
    %v378 = vpop.permute.xlu0 %377
    %381 = vset.pattern.permute.xlu0 0
    %382 = vperm.xlu0 %381, %v364
    %v383 = vpop.permute.xlu0 %382
    %386 = vset.pattern.permute.xlu0 0
    %387 = vperm.xlu0 %386, %v365
    %v388 = vpop.permute.xlu0 %387
    %391 = vset.pattern.permute.xlu0 0
    %392 = vperm.xlu0 %391, %v366
    %v393 = vpop.permute.xlu0 %392
    %396 = vset.pattern.permute.xlu0 0
    %397 = vperm.xlu0 %396, %v367
    %v398 = vpop.permute.xlu0 %397
    %401 = vset.pattern.permute.xlu0 0
    %402 = vperm.xlu0 %401, %v368
    %v403 = vpop.permute.xlu0 %402
    %406 = vset.pattern.permute.xlu0 0
    %407 = vperm.xlu0 %406, %v369
    %v408 = vpop.permute.xlu0 %407
    %vm410 = vcmask 523264
    %v412 = vsel %vm410, %v353, 0
    %v415 = vsel %vm410, %v354, 0
    %v418 = vsel %vm410, %v355, 0
    %v421 = vsel %vm410, %v356, 0
    %v424 = vsel %vm410, %v357, 0
    %v427 = vsel %vm410, %v358, 0
    %v430 = vsel %vm410, %v359, 0
    %v433 = vsel %vm410, %v360, 0
    %435 = vmatprep.subr.mxu0 0.0
    %436 = vmatpush1.msra.mxu0 %v345
    %437 = vmatprep.subr.mxu0 0.0
    %438 = vmatpush1.msra.mxu0 %v346
    %439 = vmatprep.subr.mxu0 0.0
    %440 = vmatpush1.msra.mxu0 %v347
    %441 = vmatprep.subr.mxu0 0.0
    %442 = vmatpush1.msra.mxu0 %v348
    %443 = vmatprep.subr.mxu0 0.0
    %444 = vmatpush1.msra.mxu0 %v349
    %445 = vmatprep.subr.mxu0 0.0
    %446 = vmatpush1.msra.mxu0 %v350
    %447 = vmatprep.subr.mxu0 0.0
    %448 = vmatpush1.msra.mxu0 %v351
    %449 = vmatprep.subr.mxu0 0.0
    %450 = vmatpush1.msra.mxu0 %v352
    %451 = vmatprep.subr.mxu0 0.0
    %452 = vmatpush1.msra.mxu0 0.0
    %453 = vmatprep.subr.mxu0 0.0
    %454 = vmatpush1.msra.mxu0 0.0
    %455 = vmatprep.subr.mxu0 0.0
    %456 = vmatpush1.msra.mxu0 0.0
    %457 = vmatprep.subr.mxu0 0.0
    %458 = vmatpush1.msra.mxu0 0.0
    %459 = vmatprep.subr.mxu0 0.0
    %460 = vmatpush1.msra.mxu0 0.0
    %461 = vmatprep.subr.mxu0 0.0
    %462 = vmatpush1.msra.mxu0 0.0
    %463 = vmatprep.subr.mxu0 0.0
    %464 = vmatpush1.msra.mxu0 0.0
    %465 = vmatprep.subr.mxu0 0.0
    %466 = vmatpush1.msra.mxu0 0.0
    %467 = vmatprep.subr.mxu0 0.0
    %468 = vmatpush1.msra.mxu0 0.0
    %469 = vmatprep.subr.mxu0 0.0
    %470 = vmatpush1.msra.mxu0 0.0
    %471 = vmatprep.subr.mxu0 0.0
    %472 = vmatpush1.msra.mxu0 0.0
    %473 = vmatprep.subr.mxu0 0.0
    %474 = vmatpush1.msra.mxu0 0.0
    %475 = vmatprep.subr.mxu0 0.0
    %476 = vmatpush1.msra.mxu0 0.0
    %477 = vmatprep.subr.mxu0 0.0
    %478 = vmatpush1.msra.mxu0 0.0
    %479 = vmatprep.subr.mxu0 0.0
    %480 = vmatpush1.msra.mxu0 0.0
    %481 = vmatprep.subr.mxu0 0.0
    %482 = vmatpush1.msra.mxu0 0.0
    %483 = vmatprep.subr.mxu0 0.0
    %484 = vmatpush1.msra.mxu0 0.0
    %485 = vmatprep.subr.mxu0 0.0
    %486 = vmatpush1.msra.mxu0 0.0
    %487 = vmatprep.subr.mxu0 0.0
    %488 = vmatpush1.msra.mxu0 0.0
    %489 = vmatprep.subr.mxu0 0.0
    %490 = vmatpush1.msra.mxu0 0.0
    %491 = vmatprep.subr.mxu0 0.0
    %492 = vmatpush1.msra.mxu0 0.0
    %493 = vmatprep.subr.mxu0 0.0
    %494 = vmatpush1.msra.mxu0 0.0
    %495 = vmatprep.subr.mxu0 0.0
    %496 = vmatpush1.msra.mxu0 0.0
    %497 = vmatprep.subr.mxu0 0.0
    %498 = vmatpush1.msra.mxu0 0.0
    %499 = vmatprep.mubr.f32.mxu0 0.0
    %500 = vmatmul.mubr.f32.gmra.mrb[0].mxu0 %v412
    %v501 = vpop.f32.mrb[0].mxu0
    %v502 = vadd.f32 %v373, %v501
    %v503 = vpop.f32.mrb[0].mxu0
    %504 = vmatprep.mubr.f32.mxu0 0.0
    %505 = vmatmul.mubr.f32.gmra.mrb[0].mxu0 %v415
    %v506 = vpop.f32.mrb[0].mxu0
    %v507 = vadd.f32 %v378, %v506
    %v508 = vpop.f32.mrb[0].mxu0
    %509 = vmatprep.mubr.f32.mxu0 0.0
    %510 = vmatmul.mubr.f32.gmra.mrb[0].mxu0 %v418
    %v511 = vpop.f32.mrb[0].mxu0
    %v512 = vadd.f32 %v383, %v511
    %v513 = vpop.f32.mrb[0].mxu0
    %514 = vmatprep.mubr.f32.mxu0 0.0
    %515 = vmatmul.mubr.f32.gmra.mrb[0].mxu0 %v421
    %v516 = vpop.f32.mrb[0].mxu0
    %v517 = vadd.f32 %v388, %v516
    %v518 = vpop.f32.mrb[0].mxu0
    %519 = vmatprep.mubr.f32.mxu0 0.0
    %520 = vmatmul.mubr.f32.gmra.mrb[0].mxu0 %v424
    %v521 = vpop.f32.mrb[0].mxu0
    %v522 = vadd.f32 %v393, %v521
    %v523 = vpop.f32.mrb[0].mxu0
    %524 = vmatprep.mubr.f32.mxu0 0.0
    %525 = vmatmul.mubr.f32.gmra.mrb[0].mxu0 %v427
    %v526 = vpop.f32.mrb[0].mxu0
    %v527 = vadd.f32 %v398, %v526
    %v528 = vpop.f32.mrb[0].mxu0
    %529 = vmatprep.mubr.f32.mxu0 0.0
    %530 = vmatmul.mubr.f32.gmra.mrb[0].mxu0 %v430
    %v531 = vpop.f32.mrb[0].mxu0
    %v532 = vadd.f32 %v403, %v531
    %v533 = vpop.f32.mrb[0].mxu0
    %534 = vmatprep.mubr.f32.mxu0 0.0
    %535 = vmatmul.mubr.f32.gmra.mrb[0].mxu0 %v433
    %v536 = vpop.f32.mrb[0].mxu0
    %v537 = vadd.f32 %v408, %v536
    %v538 = vpop.f32.mrb[0].mxu0
    %539 = vdwg.mxu0
    %v540 = vtanh.pop %v502
    %v541 = vtanh.pop %v507
    %v542 = vtanh.pop %v512
    %v543 = vtanh.pop %v517
    %v544 = vtanh.pop %v522
    %v545 = vtanh.pop %v527
    %v546 = vtanh.pop %v532
    %v547 = vtanh.pop %v537
    %s548 = scalar_lea.vmem %s2, 64
    %v549 = vld [vmem:[%s548] sm:$0xff]
    %v550 = vld [vmem:[%s548 + $0x8] sm:$0xff]
    %v551 = vld [vmem:[%s548 + $0x10] sm:$0xff]
    %v552 = vld [vmem:[%s548 + $0x18] sm:$0xff]
    %v553 = vld [vmem:[%s548 + $0x20] sm:$0xff]
    %v554 = vld [vmem:[%s548 + $0x28] sm:$0xff]
    %v555 = vld [vmem:[%s548 + $0x30] sm:$0xff]
    %v556 = vld [vmem:[%s548 + $0x38] sm:$0xff]
    %s557 = scalar_lea.vmem %s1, 384
    %v558 = vld [vmem:[%s557] sm:$0xff]
    %v559 = vld [vmem:[%s557 + $0x8] sm:$0xff]
    %v560 = vld [vmem:[%s557 + $0x10] sm:$0xff]
    %v561 = vld [vmem:[%s557 + $0x18] sm:$0xff]
    %v562 = vld [vmem:[%s557 + $0x20] sm:$0xff]
    %v563 = vld [vmem:[%s557 + $0x28] sm:$0xff]
    %v564 = vld [vmem:[%s557 + $0x30] sm:$0xff]
    %v565 = vld [vmem:[%s557 + $0x38] sm:$0xff]
    %567 = vset.pattern.permute.xlu0 0
    %568 = vperm.xlu0 %567, %v558
    %v569 = vpop.permute.xlu0 %568
    %572 = vset.pattern.permute.xlu0 0
    %573 = vperm.xlu0 %572, %v559
    %v574 = vpop.permute.xlu0 %573
    %577 = vset.pattern.permute.xlu0 0
    %578 = vperm.xlu0 %577, %v560
    %v579 = vpop.permute.xlu0 %578
    %582 = vset.pattern.permute.xlu0 0
    %583 = vperm.xlu0 %582, %v561
    %v584 = vpop.permute.xlu0 %583
    %587 = vset.pattern.permute.xlu0 0
    %588 = vperm.xlu0 %587, %v562
    %v589 = vpop.permute.xlu0 %588
    %592 = vset.pattern.permute.xlu0 0
    %593 = vperm.xlu0 %592, %v563
    %v594 = vpop.permute.xlu0 %593
    %597 = vset.pattern.permute.xlu0 0
    %598 = vperm.xlu0 %597, %v564
    %v599 = vpop.permute.xlu0 %598
    %602 = vset.pattern.permute.xlu0 0
    %603 = vperm.xlu0 %602, %v565
    %v604 = vpop.permute.xlu0 %603
    %v607 = vsel %vm410, %v549, 0
    %v610 = vsel %vm410, %v550, 0
    %v613 = vsel %vm410, %v551, 0
    %v616 = vsel %vm410, %v552, 0
    %v619 = vsel %vm410, %v553, 0
    %v622 = vsel %vm410, %v554, 0
    %v625 = vsel %vm410, %v555, 0
    %v628 = vsel %vm410, %v556, 0
    %630 = vmatprep.subr.mxu0 0.0
    %631 = vmatpush1.msra.mxu0 %v540
    %632 = vmatprep.subr.mxu0 0.0
    %633 = vmatpush1.msra.mxu0 %v541
    %634 = vmatprep.subr.mxu0 0.0
    %635 = vmatpush1.msra.mxu0 %v542
    %636 = vmatprep.subr.mxu0 0.0
    %637 = vmatpush1.msra.mxu0 %v543
    %638 = vmatprep.subr.mxu0 0.0
    %639 = vmatpush1.msra.mxu0 %v544
    %640 = vmatprep.subr.mxu0 0.0
    %641 = vmatpush1.msra.mxu0 %v545
    %642 = vmatprep.subr.mxu0 0.0
    %643 = vmatpush1.msra.mxu0 %v546
    %644 = vmatprep.subr.mxu0 0.0
    %645 = vmatpush1.msra.mxu0 %v547
    %646 = vmatprep.subr.mxu0 0.0
    %647 = vmatpush1.msra.mxu0 0.0
    %648 = vmatprep.subr.mxu0 0.0
    %649 = vmatpush1.msra.mxu0 0.0
    %650 = vmatprep.subr.mxu0 0.0
    %651 = vmatpush1.msra.mxu0 0.0
    %652 = vmatprep.subr.mxu0 0.0
    %653 = vmatpush1.msra.mxu0 0.0
    %654 = vmatprep.subr.mxu0 0.0
    %655 = vmatpush1.msra.mxu0 0.0
    %656 = vmatprep.subr.mxu0 0.0
    %657 = vmatpush1.msra.mxu0 0.0
    %658 = vmatprep.subr.mxu0 0.0
    %659 = vmatpush1.msra.mxu0 0.0
    %660 = vmatprep.subr.mxu0 0.0
    %661 = vmatpush1.msra.mxu0 0.0
    %662 = vmatprep.subr.mxu0 0.0
    %663 = vmatpush1.msra.mxu0 0.0
    %664 = vmatprep.subr.mxu0 0.0
    %665 = vmatpush1.msra.mxu0 0.0
    %666 = vmatprep.subr.mxu0 0.0
    %667 = vmatpush1.msra.mxu0 0.0
    %668 = vmatprep.subr.mxu0 0.0
    %669 = vmatpush1.msra.mxu0 0.0
    %670 = vmatprep.subr.mxu0 0.0
    %671 = vmatpush1.msra.mxu0 0.0
    %672 = vmatprep.subr.mxu0 0.0
    %673 = vmatpush1.msra.mxu0 0.0
    %674 = vmatprep.subr.mxu0 0.0
    %675 = vmatpush1.msra.mxu0 0.0
    %676 = vmatprep.subr.mxu0 0.0
    %677 = vmatpush1.msra.mxu0 0.0
    %678 = vmatprep.subr.mxu0 0.0
    %679 = vmatpush1.msra.mxu0 0.0
    %680 = vmatprep.subr.mxu0 0.0
    %681 = vmatpush1.msra.mxu0 0.0
    %682 = vmatprep.subr.mxu0 0.0
    %683 = vmatpush1.msra.mxu0 0.0
    %684 = vmatprep.subr.mxu0 0.0
    %685 = vmatpush1.msra.mxu0 0.0
    %686 = vmatprep.subr.mxu0 0.0
    %687 = vmatpush1.msra.mxu0 0.0
    %688 = vmatprep.subr.mxu0 0.0
    %689 = vmatpush1.msra.mxu0 0.0
    %690 = vmatprep.subr.mxu0 0.0
    %691 = vmatpush1.msra.mxu0 0.0
    %692 = vmatprep.subr.mxu0 0.0
    %693 = vmatpush1.msra.mxu0 0.0
    %694 = vmatprep.mubr.f32.mxu0 0.0
    %695 = vmatmul.mubr.f32.gmra.mrb[0].mxu0 %v607
    %v696 = vpop.f32.mrb[0].mxu0
    %v697 = vadd.f32 %v569, %v696
    %v698 = vpop.f32.mrb[0].mxu0
    %699 = vmatprep.mubr.f32.mxu0 0.0
    %700 = vmatmul.mubr.f32.gmra.mrb[0].mxu0 %v610
    %v701 = vpop.f32.mrb[0].mxu0
    %v702 = vadd.f32 %v574, %v701
    %v703 = vpop.f32.mrb[0].mxu0
    %704 = vmatprep.mubr.f32.mxu0 0.0
    %705 = vmatmul.mubr.f32.gmra.mrb[0].mxu0 %v613
    %v706 = vpop.f32.mrb[0].mxu0
    %v707 = vadd.f32 %v579, %v706
    %v708 = vpop.f32.mrb[0].mxu0
    %709 = vmatprep.mubr.f32.mxu0 0.0
    %710 = vmatmul.mubr.f32.gmra.mrb[0].mxu0 %v616
    %v711 = vpop.f32.mrb[0].mxu0
    %v712 = vadd.f32 %v584, %v711
    %v713 = vpop.f32.mrb[0].mxu0
    %714 = vmatprep.mubr.f32.mxu0 0.0
    %715 = vmatmul.mubr.f32.gmra.mrb[0].mxu0 %v619
    %v716 = vpop.f32.mrb[0].mxu0
    %v717 = vadd.f32 %v589, %v716
    %v718 = vpop.f32.mrb[0].mxu0
    %719 = vmatprep.mubr.f32.mxu0 0.0
    %720 = vmatmul.mubr.f32.gmra.mrb[0].mxu0 %v622
    %v721 = vpop.f32.mrb[0].mxu0
    %v722 = vadd.f32 %v594, %v721
    %v723 = vpop.f32.mrb[0].mxu0
    %724 = vmatprep.mubr.f32.mxu0 0.0
    %725 = vmatmul.mubr.f32.gmra.mrb[0].mxu0 %v625
    %v726 = vpop.f32.mrb[0].mxu0
    %v727 = vadd.f32 %v599, %v726
    %v728 = vpop.f32.mrb[0].mxu0
    %729 = vmatprep.mubr.f32.mxu0 0.0
    %730 = vmatmul.mubr.f32.gmra.mrb[0].mxu0 %v628
    %v731 = vpop.f32.mrb[0].mxu0
    %v732 = vadd.f32 %v604, %v731
    %v733 = vpop.f32.mrb[0].mxu0
    %734 = vdwg.mxu0
    %v735 = vtanh.pop %v697
    %v736 = vtanh.pop %v702
    %v737 = vtanh.pop %v707
    %v738 = vtanh.pop %v712
    %v739 = vtanh.pop %v717
    %v740 = vtanh.pop %v722
    %v741 = vtanh.pop %v727
    %v742 = vtanh.pop %v732
    %s743 = scalar_lea.vmem %s1, 448
    %v744 = vld [vmem:[%s743] sm:$0xff]
    %v745 = vld [vmem:[%s743 + $0x8] sm:$0xff]
    %v746 = vld [vmem:[%s743 + $0x10] sm:$0xff]
    %v747 = vld [vmem:[%s743 + $0x18] sm:$0xff]
    %v748 = vld [vmem:[%s743 + $0x20] sm:$0xff]
    %v749 = vld [vmem:[%s743 + $0x28] sm:$0xff]
    %v750 = vld [vmem:[%s743 + $0x30] sm:$0xff]
    %v751 = vld [vmem:[%s743 + $0x38] sm:$0xff]
    %753 = vset.pattern.permute.xlu0 0
    %754 = vperm.xlu0 %753, %v744
    %v755 = vpop.permute.xlu0 %754
    %758 = vset.pattern.permute.xlu0 0
    %759 = vperm.xlu0 %758, %v745
    %v760 = vpop.permute.xlu0 %759
    %763 = vset.pattern.permute.xlu0 0
    %764 = vperm.xlu0 %763, %v746
    %v765 = vpop.permute.xlu0 %764
    %768 = vset.pattern.permute.xlu0 0
    %769 = vperm.xlu0 %768, %v747
    %v770 = vpop.permute.xlu0 %769
    %773 = vset.pattern.permute.xlu0 0
    %774 = vperm.xlu0 %773, %v748
    %v775 = vpop.permute.xlu0 %774
    %778 = vset.pattern.permute.xlu0 0
    %779 = vperm.xlu0 %778, %v749
    %v780 = vpop.permute.xlu0 %779
    %783 = vset.pattern.permute.xlu0 0
    %784 = vperm.xlu0 %783, %v750
    %v785 = vpop.permute.xlu0 %784
    %788 = vset.pattern.permute.xlu0 0
    %789 = vperm.xlu0 %788, %v751
    %v790 = vpop.permute.xlu0 %789
    %v792 = vmul.f32 %v755, %v735
    %v793 = vmul.f32 %v760, %v736
    %v794 = vmul.f32 %v765, %v737
    %v795 = vmul.f32 %v770, %v738
    %v796 = vmul.f32 %v775, %v739
    %v797 = vmul.f32 %v780, %v740
    %v798 = vmul.f32 %v785, %v741
    %v799 = vmul.f32 %v790, %v742
    %v800 = vadd.f32 %v792, %v793
    %v801 = vadd.f32 %v800, %v794
    %v802 = vadd.f32 %v801, %v795
    %v803 = vadd.f32 %v802, %v796
    %v804 = vadd.f32 %v803, %v797
    %v805 = vadd.f32 %v804, %v798
    %v806 = vadd.f32 %v805, %v799
    %v807 = vrot.slane %v806, 4
    %v808 = vadd.f32 %v806, %v807
    %v809 = vrot.slane %v808, 2
    %v810 = vadd.f32 %v808, %v809
    %v811 = vrot.slane %v810, 1
    %v812 = vadd.f32 %v810, %v811
    %v813 = vld [vmem:[#allocation2] sm:$0x1]
    %815 = vset.pattern.permute.xlu0 0
    %816 = vperm.xlu0 %815, %v813
    %v817 = vpop.permute.xlu0 %816
    %v819 = vlaneseq
    %v820 = vshrl.u32 %v819, 7
    %v821 = vsub.s32 0, %v820
    %v822 = vrot.slane %v817, %v821
    %v823 = vadd.f32 %v812, %v822
    %824 = vst [vmem:[#allocation3] sm:$0x1] %v823
    // Predicated region
    $region18: #{tpu_custom_call.1} parent=1 // pred_check
      _
    $region19: #{tpu_custom_call.1} parent=1 // pred_check_branch
      %826 = sbr.rel (0) target = $region21
    $region20: #{tpu_custom_call.1} parent=1 // pred_region
      %s828 = ssub.s32 16, 16
      %829 = vsyncadd [#allocation4], %s828
      %s831 = sshll.u32 [#allocation3], 4
      %s832 = int_to_ptr.vmem [resolvable:$true] %s831
      %834 = dma.vmem_to_hbm [thread:$0]  %s832, 16, %s4, [#allocation4]
    $region21: #{tpu_custom_call.1} parent=1 // pred_fallthru
      _
    // Predicated region
    $region22: #{tpu_custom_call.1} parent=1 // pred_check
      _
    $region23: #{tpu_custom_call.1} parent=1 // pred_check_branch
      %836 = sbr.rel (0) target = $region25
    $region24: #{tpu_custom_call.1} parent=1 // pred_region
      %837 = dma.done [#allocation4], 16
    $region25: #{tpu_custom_call.1} parent=1 // pred_fallthru
      _
    %838 = vsyncpa [#allocation4], 1

</llo_original>
